<compile_context>
chip_gen: v7x
topology: tpu7x:2x2x1
jax: 0.10.0
libtpu: 0.0.40
codegen_flags: <defaults>
</compile_context>

<pallas_src>
import functools

import jax
import jax.numpy as jnp
from jax.experimental import pallas as pl
from jax.experimental.pallas import tpu as pltpu


_TARGET_TILE_BYTES = 2 << 20    # per input tile; x2 (in+out) x2 (double buffer) ~ 8 MiB
_VMEM_LIMIT_BYTES = 32 << 20    # safe on v5e/v6e/v7x; well above actual use
_PACK_LANES = 128               # vreg lane width


# --------------------------------------------------------------------------
# Kernels
# --------------------------------------------------------------------------
def _ln_rows_kernel(x_ref, w_ref, b_ref, o_ref, *, eps):
    """channels_last (general): x_ref is (TM, C); normalize along the last axis."""
    x = x_ref[...].astype(jnp.float32)
    mu = jnp.mean(x, axis=-1, keepdims=True)
    xc = x - mu
    var = jnp.mean(xc * xc, axis=-1, keepdims=True)    # biased variance (torch)
    inv = jax.lax.rsqrt(var + eps)
    w = w_ref[...].astype(jnp.float32)                 # (1, C)
    b = b_ref[...].astype(jnp.float32)                 # (1, C)
    o_ref[...] = (xc * inv * w + b).astype(o_ref.dtype)


def _ln_rows_packed_kernel(x_ref, w_ref, b_ref, m_ref, o_ref, *, eps, inv_c):
    """channels_last, lane-packed: x_ref is (TM, 128) holding G = 128//C logical
    rows per lane-row.  Segmented mean/var via block-diagonal group-sum matmul
    (MXU slot), keeping all VPU work at full lane density."""
    x = x_ref[...].astype(jnp.float32)                 # (TM, 128)
    m = m_ref[...]                                     # (128, 128) 0/1 group-sum
    mu = jnp.dot(x, m, preferred_element_type=jnp.float32) * inv_c
    xc = x - mu
    var = jnp.dot(xc * xc, m, preferred_element_type=jnp.float32) * inv_c
    inv = jax.lax.rsqrt(var + eps)
    w = w_ref[...].astype(jnp.float32)                 # (1, 128) = weight tiled G times
    b = b_ref[...].astype(jnp.float32)                 # (1, 128)
    o_ref[...] = (xc * inv * w + b).astype(o_ref.dtype)


def _ln_cfirst_kernel(x_ref, w_ref, b_ref, o_ref, *, eps):
    """channels_first: x_ref is (TN, C, THW); normalize along axis 1 (C)."""
    x = x_ref[...].astype(jnp.float32)                 # (TN, C, THW)
    mu = jnp.mean(x, axis=1, keepdims=True)            # (TN, 1, THW)
    xc = x - mu
    var = jnp.mean(xc * xc, axis=1, keepdims=True)
    inv = jax.lax.rsqrt(var + eps)
    w = w_ref[...].astype(jnp.float32)[None]           # (1, C, 1)
    b = b_ref[...].astype(jnp.float32)[None]           # (1, C, 1)
    o_ref[...] = (xc * inv * w + b).astype(o_ref.dtype)


# --------------------------------------------------------------------------
# Tile sizing
# --------------------------------------------------------------------------
def _choose_row_tile(rows, width, itemsize):
    """Row tile for a (rows, width) layout: big enough to amortize per-step
    overhead, small enough to keep >= ~4 grid steps (megacore sharding)."""
    tm = _TARGET_TILE_BYTES // max(1, width * itemsize)
    tm = max(8, min(tm, 2048))
    tm = min(tm, max(8, pl.cdiv(rows, 4)))
    tm = max(8, (tm // 8) * 8)                         # sublane alignment
    if tm >= rows:
        return rows                                    # full-extent block is legal
    return tm


def _choose_hw_tile(hw, C, itemsize):
    """Lane tile (H*W axis) for the channels_first (N, C, HW) layout."""
    thw = _TARGET_TILE_BYTES // max(1, C * itemsize)
    if thw >= hw:
        return hw                                      # full-extent block is legal
    thw = max(128, (thw // 128) * 128)                 # lane alignment
    if thw >= hw:
        return hw
    return thw


# --------------------------------------------------------------------------
# Wrappers
# --------------------------------------------------------------------------
def _layernorm_rows_packed(x2d, weight, bias, eps, G):
    """Lane-packed LayerNorm for (rows, C) with C < 128, 128 % C == 0, rows % G == 0."""
    rows, C = x2d.shape
    L = G * C                                          # == 128
    packed_rows = rows // G
    itemsize = jnp.dtype(x2d.dtype).itemsize
    tm = _choose_row_tile(packed_rows, L, itemsize)
    grid = (pl.cdiv(packed_rows, tm),)

    xp = x2d.reshape(packed_rows, L)                   # free, contiguous reshape
    w_t = jnp.tile(weight.reshape(-1), G).reshape(1, L)
    b_t = jnp.tile(bias.reshape(-1), G).reshape(1, L)
    grp = jnp.arange(L, dtype=jnp.int32) // C          # group id per lane
    m = (grp[:, None] == grp[None, :]).astype(jnp.float32)   # block-diag group sum

    out = pl.pallas_call(
        functools.partial(_ln_rows_packed_kernel, eps=eps, inv_c=1.0 / C),
        out_shape=jax.ShapeDtypeStruct((packed_rows, L), x2d.dtype),
        grid_spec=pltpu.PrefetchScalarGridSpec(
            num_scalar_prefetch=0,
            grid=grid,
            in_specs=[
                pl.BlockSpec((tm, L), lambda i: (i, 0)),
                pl.BlockSpec((1, L), lambda i: (0, 0)),
                pl.BlockSpec((1, L), lambda i: (0, 0)),
                pl.BlockSpec((L, L), lambda i: (0, 0)),
            ],
            out_specs=pl.BlockSpec((tm, L), lambda i: (i, 0)),
        ),
        compiler_params=pltpu.CompilerParams(
            dimension_semantics=("parallel",),
            vmem_limit_bytes=_VMEM_LIMIT_BYTES,
        ),
        cost_estimate=pl.CostEstimate(
            flops=8 * rows * C + 4 * packed_rows * L * L,
            transcendentals=rows,
            bytes_accessed=2 * rows * C * itemsize + 2 * L * 4 + L * L * 4,
        ),
    )(xp, w_t, b_t, m)
    return out.reshape(rows, C)


def _layernorm_rows(x2d, weight, bias, eps):
    """LayerNorm over the last axis of a (rows, C) array."""
    rows, C = x2d.shape
    itemsize = jnp.dtype(x2d.dtype).itemsize

    # Lane-dense packed path for small C (biggest single lever: unpacked C=32
    # would use only 32 of 128 lanes per vreg on every load/store/VPU op).
    if 0 < C < _PACK_LANES and _PACK_LANES % C == 0:
        G = _PACK_LANES // C
        if rows % G == 0:
            return _layernorm_rows_packed(x2d, weight, bias, eps, G)
        # TODO(synk): process bulk rows packed + remainder rows plain instead of
        # falling back wholesale when rows % G != 0.

    tm = _choose_row_tile(rows, C, itemsize)
    grid = (pl.cdiv(rows, tm),)                        # Pallas masks the edge block

    w2 = weight.reshape(1, C)
    b2 = bias.reshape(1, C)

    return pl.pallas_call(
        functools.partial(_ln_rows_kernel, eps=eps),
        out_shape=jax.ShapeDtypeStruct((rows, C), x2d.dtype),
        grid_spec=pltpu.PrefetchScalarGridSpec(
            num_scalar_prefetch=0,
            grid=grid,
            in_specs=[
                pl.BlockSpec((tm, C), lambda i: (i, 0)),
                pl.BlockSpec((1, C), lambda i: (0, 0)),
                pl.BlockSpec((1, C), lambda i: (0, 0)),
            ],
            out_specs=pl.BlockSpec((tm, C), lambda i: (i, 0)),
        ),
        compiler_params=pltpu.CompilerParams(
            dimension_semantics=("parallel",),
            vmem_limit_bytes=_VMEM_LIMIT_BYTES,
        ),
        cost_estimate=pl.CostEstimate(
            flops=8 * rows * C,
            transcendentals=rows,
            bytes_accessed=2 * rows * C * itemsize + 2 * C * 4,
        ),
    )(x2d, w2, b2)


def _layernorm_channels_first(x, weight, bias, eps):
    """LayerNorm over axis 1 of an NCHW tensor, without any transposes."""
    n, C, h, w = x.shape
    hw = h * w
    itemsize = jnp.dtype(x.dtype).itemsize

    bytes_per_image = C * hw * itemsize
    if bytes_per_image <= _TARGET_TILE_BYTES:
        # Whole images per tile; block several batch images together so small
        # images don't pay one grid step each.
        tn = max(1, min(n, _TARGET_TILE_BYTES // max(1, bytes_per_image)))
        thw = hw
    else:
        tn = 1
        thw = _choose_hw_tile(hw, C, itemsize)
    grid = (pl.cdiv(n, tn), pl.cdiv(hw, thw))

    x3 = x.reshape(n, C, hw)                           # free (contiguous) reshape
    w2 = weight.reshape(C, 1)
    b2 = bias.reshape(C, 1)

    out = pl.pallas_call(
        functools.partial(_ln_cfirst_kernel, eps=eps),
        out_shape=jax.ShapeDtypeStruct((n, C, hw), x.dtype),
        grid_spec=pltpu.PrefetchScalarGridSpec(
            num_scalar_prefetch=0,
            grid=grid,
            in_specs=[
                pl.BlockSpec((tn, C, thw), lambda i, j: (i, 0, j)),
                pl.BlockSpec((C, 1), lambda i, j: (0, 0)),
                pl.BlockSpec((C, 1), lambda i, j: (0, 0)),
            ],
            out_specs=pl.BlockSpec((tn, C, thw), lambda i, j: (i, 0, j)),
        ),
        compiler_params=pltpu.CompilerParams(
            dimension_semantics=("parallel", "parallel"),
            vmem_limit_bytes=_VMEM_LIMIT_BYTES,
        ),
        cost_estimate=pl.CostEstimate(
            flops=8 * n * C * hw,
            transcendentals=n * hw,
            bytes_accessed=2 * n * C * hw * itemsize + 2 * C * 4,
        ),
    )(x3, w2, b2)
    return out.reshape(n, C, h, w)


class LayerNorm:
    """JAX/Pallas port of the ConvNeXt LayerNorm module."""

    def __init__(self, normalized_shape, eps=1e-6, data_format="channels_last"):
        if data_format not in ("channels_last", "channels_first"):
            raise NotImplementedError
        if isinstance(normalized_shape, (tuple, list)):
            assert len(normalized_shape) == 1
            normalized_shape = normalized_shape[0]
        # Deterministic init per the PyTorch module: ones / zeros.
        self.weight = jnp.ones((normalized_shape,), jnp.float32)
        self.bias = jnp.zeros((normalized_shape,), jnp.float32)
        self.eps = eps
        self.data_format = data_format
        self.normalized_shape = (normalized_shape,)

    def __call__(self, x):
        C = self.normalized_shape[0]
        if self.data_format == "channels_last":
            lead = x.shape[:-1]
            assert x.shape[-1] == C
            y = _layernorm_rows(x.reshape(-1, C), self.weight, self.bias, self.eps)
            return y.reshape(*lead, C)
        else:  # channels_first: NCHW, normalize over axis 1 (no transposes)
            assert x.shape[1] == C
            return _layernorm_channels_first(x, self.weight, self.bias, self.eps)


# --------------------------------------------------------------------------
# Pure-JAX references (match the PyTorch module)
# --------------------------------------------------------------------------
def _ref_channels_first(x, w, b, eps):
    u = x.mean(1, keepdims=True)
    s = ((x - u) ** 2).mean(1, keepdims=True)
    xn = (x - u) / jnp.sqrt(s + eps)
    return w[None, :, None, None] * xn + b[None, :, None, None]


def _ref_channels_last(x, w, b, eps):
    u = x.mean(-1, keepdims=True)
    s = ((x - u) ** 2).mean(-1, keepdims=True)
    xn = (x - u) / jnp.sqrt(s + eps)
    return xn * w + b


if __name__ == "__main__":
    key = jax.random.PRNGKey(0)
    k1, k2, k3, kw, kb = jax.random.split(key, 5)

    # channels_first: NCHW input, normalize over C (no transposes in the path).
    x_cf = jax.random.normal(k1, (2, 4, 16, 16), jnp.float32)
    ln_cf = LayerNorm(4, eps=1e-6, data_format="channels_first")
    ln_cf.weight = 1.0 + 0.1 * jax.random.normal(kw, (4,), jnp.float32)
    ln_cf.bias = 0.1 * jax.random.normal(kb, (4,), jnp.float32)
    y_cf = jax.block_until_ready(ln_cf(x_cf))
    ref_cf = _ref_channels_first(x_cf, ln_cf.weight, ln_cf.bias, ln_cf.eps)
    assert y_cf.shape == x_cf.shape
    assert jnp.allclose(y_cf, ref_cf, atol=1e-4, rtol=1e-4)

    # channels_last, C=32 and rows % (128//C) == 0: exercises the lane-packed
    # path (full 128-lane vregs + MXU segmented reduce).
    x_cl = jax.random.normal(k2, (2, 8, 8, 32), jnp.float32)
    ln_cl = LayerNorm(32, eps=1e-6, data_format="channels_last")
    ln_cl.weight = 1.0 + 0.05 * jnp.arange(32, dtype=jnp.float32)
    ln_cl.bias = -0.02 * jnp.arange(32, dtype=jnp.float32)
    y_cl = jax.block_until_ready(ln_cl(x_cl))
    ref_cl = _ref_channels_last(x_cl, ln_cl.weight, ln_cl.bias, ln_cl.eps)
    assert y_cl.shape == x_cl.shape
    assert jnp.allclose(y_cl, ref_cl, atol=1e-4, rtol=1e-4)

    # channels_last with rows that do NOT divide the packing factor or the row
    # tile: exercises the general row kernel + Pallas' edge-block masking.
    x_odd = jax.random.normal(k3, (3, 5, 7, 32), jnp.float32)
    ln_odd = LayerNorm(32, eps=1e-6, data_format="channels_last")
    y_odd = jax.block_until_ready(ln_odd(x_odd))
    ref_odd = _ref_channels_last(x_odd, ln_odd.weight, ln_odd.bias, ln_odd.eps)
    assert y_odd.shape == x_odd.shape
    assert jnp.allclose(y_odd, ref_odd, atol=1e-4, rtol=1e-4)

    print("KERNEL_OK")
</pallas_src>

<mosaic_0001>
module attributes {stable_mosaic.version = 11 : i64} {
  func.func @_ln_cfirst_kernel(%arg0: i32, %arg1: i32, %arg2: memref<2x4x256xf32, #tpu.memory_space<vmem>>, %arg3: memref<4x1xf32, #tpu.memory_space<vmem>>, %arg4: memref<4x1xf32, #tpu.memory_space<vmem>>, %arg5: memref<2x4x256xf32, #tpu.memory_space<vmem>>) attributes {dimension_semantics = [#tpu.dimension_semantics<parallel>, #tpu.dimension_semantics<parallel>], iteration_bounds = array<i64: 1, 1>, scalar_prefetch = 0 : i64, scratch_operands = 0 : i64, tpu.core_type = #tpu.core_type<tc>, window_params = [{transform_indices = @transform_0, window_bounds = array<i64: 2, 4, 256>}, {pipeline_mode = #tpu.pipeline_mode<synchronous>, transform_indices = @transform_1, window_bounds = array<i64: 4, 1>}, {pipeline_mode = #tpu.pipeline_mode<synchronous>, transform_indices = @transform_2, window_bounds = array<i64: 4, 1>}, {transform_indices = @transform_3, window_bounds = array<i64: 2, 4, 256>}]} {
    %c0 = arith.constant 0 : index
    %c0_0 = arith.constant 0 : index
    %c0_1 = arith.constant 0 : index
    %0 = vector.load %arg2[%c0, %c0_0, %c0_1] : memref<2x4x256xf32, #tpu.memory_space<vmem>>, vector<2x4x256xf32>
    %cst = arith.constant dense<0.000000e+00> : vector<2x256xf32>
    %1 = vector.multi_reduction <add>, %0, %cst [1] : vector<2x4x256xf32> to vector<2x256xf32>
    %2 = vector.shape_cast %1 : vector<2x256xf32> to vector<2x1x256xf32>
    %cst_2 = arith.constant 4.000000e+00 : f32
    %3 = vector.broadcast %cst_2 : f32 to vector<2x1x256xf32>
    %4 = arith.divf %2, %3 : vector<2x1x256xf32>
    %5 = vector.broadcast %4 : vector<2x1x256xf32> to vector<2x4x256xf32>
    %6 = arith.subf %0, %5 : vector<2x4x256xf32>
    %7 = arith.mulf %6, %6 : vector<2x4x256xf32>
    %cst_3 = arith.constant dense<0.000000e+00> : vector<2x256xf32>
    %8 = vector.multi_reduction <add>, %7, %cst_3 [1] : vector<2x4x256xf32> to vector<2x256xf32>
    %9 = vector.shape_cast %8 : vector<2x256xf32> to vector<2x1x256xf32>
    %cst_4 = arith.constant 4.000000e+00 : f32
    %10 = vector.broadcast %cst_4 : f32 to vector<2x1x256xf32>
    %11 = arith.divf %9, %10 : vector<2x1x256xf32>
    %cst_5 = arith.constant 9.99999997E-7 : f32
    %12 = vector.broadcast %cst_5 : f32 to vector<2x1x256xf32>
    %13 = arith.addf %11, %12 : vector<2x1x256xf32>
    %14 = math.rsqrt %13 : vector<2x1x256xf32>
    %c0_6 = arith.constant 0 : index
    %c0_7 = arith.constant 0 : index
    %15 = vector.load %arg3[%c0_6, %c0_7] : memref<4x1xf32, #tpu.memory_space<vmem>>, vector<4x1xf32>
    %16 = vector.shape_cast %15 : vector<4x1xf32> to vector<1x4x1xf32>
    %c0_8 = arith.constant 0 : index
    %c0_9 = arith.constant 0 : index
    %17 = vector.load %arg4[%c0_8, %c0_9] : memref<4x1xf32, #tpu.memory_space<vmem>>, vector<4x1xf32>
    %18 = vector.shape_cast %17 : vector<4x1xf32> to vector<1x4x1xf32>
    %19 = vector.broadcast %14 : vector<2x1x256xf32> to vector<2x4x256xf32>
    %20 = arith.mulf %6, %19 : vector<2x4x256xf32>
    %21 = vector.broadcast %16 : vector<1x4x1xf32> to vector<2x4x256xf32>
    %22 = arith.mulf %20, %21 : vector<2x4x256xf32>
    %23 = vector.broadcast %18 : vector<1x4x1xf32> to vector<2x4x256xf32>
    %24 = arith.addf %22, %23 : vector<2x4x256xf32>
    %c0_10 = arith.constant 0 : index
    %c0_11 = arith.constant 0 : index
    %c0_12 = arith.constant 0 : index
    %25 = vector.load %arg5[%c0_10, %c0_11, %c0_12] : memref<2x4x256xf32, #tpu.memory_space<vmem>>, vector<2x4x256xf32>
    tpu.vector_store %arg5[%c0_10, %c0_11, %c0_12], %24 {strides = array<i32>} : memref<2x4x256xf32, #tpu.memory_space<vmem>>, vector<2x4x256xf32>,
    return
  }
  func.func @transform_0(%arg0: i32, %arg1: i32) -> (i32, i32, i32) {
    %c0_i32 = arith.constant 0 : i32
    %c0_i32_0 = arith.constant 0 : i32
    return %arg0, %c0_i32, %arg1 : i32, i32, i32
  }
  func.func @transform_1(%arg0: i32, %arg1: i32) -> (i32, i32) {
    %c0_i32 = arith.constant 0 : i32
    %c0_i32_0 = arith.constant 0 : i32
    %c0_i32_1 = arith.constant 0 : i32
    return %c0_i32, %c0_i32_0 : i32, i32
  }
  func.func @transform_2(%arg0: i32, %arg1: i32) -> (i32, i32) {
    %c0_i32 = arith.constant 0 : i32
    %c0_i32_0 = arith.constant 0 : i32
    %c0_i32_1 = arith.constant 0 : i32
    return %c0_i32, %c0_i32_0 : i32, i32
  }
  func.func @transform_3(%arg0: i32, %arg1: i32) -> (i32, i32, i32) {
    %c0_i32 = arith.constant 0 : i32
    %c0_i32_0 = arith.constant 0 : i32
    return %arg0, %c0_i32, %arg1 : i32, i32, i32
  }
}

</mosaic_0001>

<llo_original>
// kernel: tpu_custom_call.1
$region0: #{tpu_custom_call.1}
  #allocation0 [shape = 'u32[]', space=smem, size = 0x4, offset = 0x4, fixed_abs, tag = 'smem constant byte address 0x4 - core index']
  #allocation1 [shape = 'u32[144,128]{1,0:T(1,128)}', space=vmem, size = 0x12000, scoped, tag = 'internal scratch']
  %s0 = inlined_call_operand.hbm [shape: f32[2,4,256], index: 0, kind: input, shape index: {}]
  %s1 = inlined_call_operand.vmem [shape: f32[4,1], index: 1, kind: input, shape index: {}]
  %s2 = inlined_call_operand.vmem [shape: f32[4,1], index: 2, kind: input, shape index: {}]
  %s3 = inlined_call_operand.hbm [shape: f32[2,4,256], index: 3, kind: output, shape index: {}]
  %s4 = sld [smem:[#allocation0]]
  $region26: #{tpu_custom_call.1} parent=0
    _
  %s6 = ssub.s32 1, %s4
  %s7 = scalar_select 0, %s6, %s4
  $region1: #{tpu_custom_call.1} parent=0
    #allocation2 [shape = 'u8[8192]{0}', space=vmem, size = 0x2000, scoped, tag = 'input window, operand 0, single buffered']
    #allocation3 [shape = 's32[1]{0}', space=sflag, size = 0x4, scoped, tag = 'scoped memory for tpu_custom_call.1']
    #allocation4 [shape = 's32[1]{0}', space=sflag, size = 0x4, scoped, tag = 'scoped memory for tpu_custom_call.1']
    #allocation5 [shape = 'u8[8192]{0}', space=vmem, size = 0x2000, scoped, tag = 'output window, operand 0, single buffered']
    %8 = vsyncpa [#allocation3], 0
    %9 = vsyncpa [#allocation4], 0
    // Predicated region
    $region2: #{tpu_custom_call.1} parent=1 // pred_check
      _
    $region3: #{tpu_custom_call.1} parent=1 // pred_check_branch
      %11 = sbr.rel (0) target = $region5
    $region4: #{tpu_custom_call.1} parent=1 // pred_region
      %s13 = ssub.s32 256, 256
      %14 = vsyncadd [#allocation3], %s13
      %s15 = sshll.u32 [#allocation2], 4
      %s16 = int_to_ptr.vmem [resolvable:$true] %s15
      %21 = dma.hbm_to_vmem [thread:$0]  %s0, 256, %s16, [#allocation3], 128, 128, 8
    $region5: #{tpu_custom_call.1} parent=1 // pred_fallthru
      _
    // Predicated region
    $region6: #{tpu_custom_call.1} parent=1 // pred_check
      _
    $region7: #{tpu_custom_call.1} parent=1 // pred_check_branch
      %23 = sbr.rel (0) target = $region9
    $region8: #{tpu_custom_call.1} parent=1 // pred_region
      _
    $region9: #{tpu_custom_call.1} parent=1 // pred_fallthru
      _
    // Predicated region
    $region10: #{tpu_custom_call.1} parent=1 // pred_check
      _
    $region11: #{tpu_custom_call.1} parent=1 // pred_check_branch
      %25 = sbr.rel (0) target = $region13
    $region12: #{tpu_custom_call.1} parent=1 // pred_region
      _
    $region13: #{tpu_custom_call.1} parent=1 // pred_fallthru
      _
    // Predicated region
    $region14: #{tpu_custom_call.1} parent=1 // pred_check
      _
    $region15: #{tpu_custom_call.1} parent=1 // pred_check_branch
      %27 = sbr.rel (0) target = $region17
    $region16: #{tpu_custom_call.1} parent=1 // pred_region
      %28 = dma.done [#allocation3], 256
    $region17: #{tpu_custom_call.1} parent=1 // pred_fallthru
      _
    %v29 = vld [vmem:[#allocation2] sm:$0xff]
    %v30 = vld [vmem:[#allocation2 + $0x8] sm:$0xff]
    %v33 = vcombine.high %v29, %v29
    %v34 = vcombine.high %v30, %v30
    %vm37 = vcmask 1043456
    %v38 = vsel %vm37, %v29, 0.0
    %v39 = vrot.slane %v38, 4
    %v40 = vadd.f32 %v38, %v39
    %v41 = vrot.slane %v40, 2
    %v42 = vadd.f32 %v40, %v41
    %v43 = vrot.slane %v42, 1
    %v44 = vadd.f32 %v42, %v43
    %v45 = vsel %vm37, %v33, 0.0
    %v46 = vrot.slane %v45, 4
    %v47 = vadd.f32 %v45, %v46
    %v48 = vrot.slane %v47, 2
    %v49 = vadd.f32 %v47, %v48
    %v50 = vrot.slane %v49, 1
    %v51 = vadd.f32 %v49, %v50
    %v52 = vsel %vm37, %v30, 0.0
    %v53 = vrot.slane %v52, 4
    %v54 = vadd.f32 %v52, %v53
    %v55 = vrot.slane %v54, 2
    %v56 = vadd.f32 %v54, %v55
    %v57 = vrot.slane %v56, 1
    %v58 = vadd.f32 %v56, %v57
    %v59 = vsel %vm37, %v34, 0.0
    %v60 = vrot.slane %v59, 4
    %v61 = vadd.f32 %v59, %v60
    %v62 = vrot.slane %v61, 2
    %v63 = vadd.f32 %v61, %v62
    %v64 = vrot.slane %v63, 1
    %v65 = vadd.f32 %v63, %v64
    %v66 = vrcp.pop 4.0
    %v67 = vmul.f32 %v44, %v66
    %v68 = vmul.f32 %v51, %v66
    %v69 = vmul.f32 %v58, %v66
    %v70 = vmul.f32 %v65, %v66
    %v75 = vcombine.low %v67, %v68
    %v76 = vcombine.low %v69, %v70
    %v79 = vsub.f32 %v29, %v75
    %v80 = vsub.f32 %v30, %v76
    %v81 = vmul.f32 %v79, %v79
    %v82 = vmul.f32 %v80, %v80
    %v85 = vcombine.high %v81, %v81
    %v86 = vcombine.high %v82, %v82
    %v89 = vsel %vm37, %v81, 0.0
    %v90 = vrot.slane %v89, 4
    %v91 = vadd.f32 %v89, %v90
    %v92 = vrot.slane %v91, 2
    %v93 = vadd.f32 %v91, %v92
    %v94 = vrot.slane %v93, 1
    %v95 = vadd.f32 %v93, %v94
    %v96 = vsel %vm37, %v85, 0.0
    %v97 = vrot.slane %v96, 4
    %v98 = vadd.f32 %v96, %v97
    %v99 = vrot.slane %v98, 2
    %v100 = vadd.f32 %v98, %v99
    %v101 = vrot.slane %v100, 1
    %v102 = vadd.f32 %v100, %v101
    %v103 = vsel %vm37, %v82, 0.0
    %v104 = vrot.slane %v103, 4
    %v105 = vadd.f32 %v103, %v104
    %v106 = vrot.slane %v105, 2
    %v107 = vadd.f32 %v105, %v106
    %v108 = vrot.slane %v107, 1
    %v109 = vadd.f32 %v107, %v108
    %v110 = vsel %vm37, %v86, 0.0
    %v111 = vrot.slane %v110, 4
    %v112 = vadd.f32 %v110, %v111
    %v113 = vrot.slane %v112, 2
    %v114 = vadd.f32 %v112, %v113
    %v115 = vrot.slane %v114, 1
    %v116 = vadd.f32 %v114, %v115
    %v117 = vmul.f32 %v95, %v66
    %v118 = vmul.f32 %v102, %v66
    %v119 = vmul.f32 %v109, %v66
    %v120 = vmul.f32 %v116, %v66
    %v121 = vadd.f32 %v117, 1e-06
    %v122 = vadd.f32 %v118, 1e-06
    %v123 = vadd.f32 %v119, 1e-06
    %v124 = vadd.f32 %v120, 1e-06
    %v125 = vrsqrt.pop %v121
    %v126 = vrsqrt.pop %v122
    %v127 = vrsqrt.pop %v123
    %v128 = vrsqrt.pop %v124
    %v129 = vld [vmem:[%s1] sm:$0xf]
    %v130 = vld [vmem:[%s2] sm:$0xf]
    %v135 = vcombine.low %v125, %v126
    %v136 = vcombine.low %v127, %v128
    %v139 = vmul.f32 %v79, %v135
    %v140 = vmul.f32 %v80, %v136
    %142 = vset.pattern.permute.xlu0 0
    %143 = vperm.xlu0 %142, %v129
    %v144 = vpop.permute.xlu0 %143
    %v146 = vunpack.c.l.s4 839922192
    %v147 = vunpack.c.0.s8 %v146
    %v148 = vlaneseq
    %v149 = vshrl.u32 %v148, 7
    %v150 = vsub.s32 %v147, %v149
    %v151 = vrot.slane %v144, %v150
    %v153 = vmul.f32 %v139, %v151
    %v154 = vmul.f32 %v140, %v151
    %156 = vset.pattern.permute.xlu0 0
    %157 = vperm.xlu0 %156, %v130
    %v158 = vpop.permute.xlu0 %157
    %v160 = vunpack.c.l.s4 839922192
    %v161 = vunpack.c.0.s8 %v160
    %v162 = vlaneseq
    %v163 = vshrl.u32 %v162, 7
    %v164 = vsub.s32 %v161, %v163
    %v165 = vrot.slane %v158, %v164
    %v167 = vadd.f32 %v153, %v165
    %v168 = vadd.f32 %v154, %v165
    %169 = vst [vmem:[#allocation5] sm:$0xff] %v167
    %170 = vst [vmem:[#allocation5 + $0x8] sm:$0xff] %v168
    // Predicated region
    $region18: #{tpu_custom_call.1} parent=1 // pred_check
      _
    $region19: #{tpu_custom_call.1} parent=1 // pred_check_branch
      %172 = sbr.rel (0) target = $region21
    $region20: #{tpu_custom_call.1} parent=1 // pred_region
      %s174 = ssub.s32 256, 256
      %175 = vsyncadd [#allocation4], %s174
      %s176 = sshll.u32 [#allocation5], 4
      %s177 = int_to_ptr.vmem [resolvable:$true] %s176
      %182 = dma.vmem_to_hbm [thread:$0]  %s177, 256, %s3, [#allocation4], 128, 128, 8
    $region21: #{tpu_custom_call.1} parent=1 // pred_fallthru
      _
    // Predicated region
    $region22: #{tpu_custom_call.1} parent=1 // pred_check
      _
    $region23: #{tpu_custom_call.1} parent=1 // pred_check_branch
      %184 = sbr.rel (0) target = $region25
    $region24: #{tpu_custom_call.1} parent=1 // pred_region
      %185 = dma.done [#allocation4], 256
    $region25: #{tpu_custom_call.1} parent=1 // pred_fallthru
      _
    %186 = vsyncpa [#allocation3], 1
    %187 = vsyncpa [#allocation4], 1

</llo_original>
